<compile_context>
chip_gen: v6e
topology: v6e:2x2x1
jax: 0.10.0
libtpu: 0.0.40
codegen_flags: <defaults>
</compile_context>

<pallas_src>
import jax
import jax.numpy as jnp
from jax import lax
from jax.experimental import pallas as pl
from jax.experimental.pallas import tpu as pltpu

NUM_BINS = 512


# ---------------------------------------------------------------------------
# Kernel 1: per-frame color histogram (replaces scatter_add) + L2 normalize
# ---------------------------------------------------------------------------
def _make_histogram_kernel(frames_per_block: int, hw: int):
    F = frames_per_block

    def kernel(frames_ref, o_ref):
        # frames_ref: (F, 3, HW) int8 (bit-view of uint8; pixels lane-dense)
        # o_ref:      (F, 8, 64) f32  -- bin index = R*64 + G*8 + B, flattened
        #                               to 512 in the wrapper (pure reshape).
        iota8 = lax.broadcasted_iota(jnp.int32, (8, hw), 0)     # hoisted out of loop
        iota64 = lax.broadcasted_iota(jnp.int32, (64, hw), 0)

        def body(f, carry):
            # int8 view -> widen and mask to recover the original uint8 values.
            rgb = frames_ref[f].astype(jnp.int32) & 0xFF        # (3, HW), 0..255
            r = rgb[0:1, :] >> 5                                # (1, HW) 0..7
            g = rgb[1:2, :] >> 5
            b = rgb[2:3, :] >> 5
            hi = r                                              # R bucket (8)
            lo = (g << 3) + b                                   # G*8+B bucket (64)
            # Split one-hots (72*HW compares instead of 512*HW).
            oh_hi = (iota8 == hi).astype(jnp.float32).astype(jnp.bfloat16)   # (8, HW)
            oh_lo = (iota64 == lo).astype(jnp.float32).astype(jnp.bfloat16)  # (64, HW)
            # hist[R, GB] = sum_p oh_hi[R, p] * oh_lo[GB, p]  (MXU, exact in f32)
            hist = lax.dot_general(
                oh_hi, oh_lo, (((1,), (1,)), ((), ())),
                preferred_element_type=jnp.float32)             # (8, 64)
            # L2 normalize: one scalar reciprocal + broadcast multiply.
            ss = jnp.sum(hist * hist, axis=1, keepdims=True)    # (8, 1)
            ss = jnp.sum(ss, axis=0, keepdims=True)             # (1, 1)
            norm = jnp.sqrt(ss)
            inv = pl.reciprocal(jnp.maximum(norm, 1e-12))       # F.normalize eps
            o_ref[f] = hist * inv
            return carry

        lax.fori_loop(0, F, body, 0)

    return kernel


def compute_color_histograms(frames, frames_per_block: int = 8):
    """frames: (B, T, H, W, 3), integer values in 0..255 -> (B, T, 512) f32."""
    B, T, H, W, C = frames.shape
    assert C == 3
    HW = H * W
    BT = B * T

    # Keep pixel data 8-bit in HBM; int8 bit-view (widened + masked in-kernel)
    # for maximally portable Mosaic support.  Channels on sublanes, pixels on lanes.
    ff_u8 = frames.astype(jnp.uint8)                       # no-op if already uint8
    ff_i8 = lax.bitcast_convert_type(ff_u8, jnp.int8)
    ff = ff_i8.reshape(BT, HW, 3).transpose(0, 2, 1)       # (BT, 3, HW) int8

    F = min(frames_per_block, BT)
    nblk = pl.cdiv(BT, F)
    BT_pad = nblk * F
    if BT_pad != BT:
        ff = jnp.pad(ff, ((0, BT_pad - BT), (0, 0), (0, 0)))

    kernel = _make_histogram_kernel(F, HW)
    out = pl.pallas_call(
        kernel,
        out_shape=jax.ShapeDtypeStruct((BT_pad, 8, 64), jnp.float32),
        grid_spec=pltpu.PrefetchScalarGridSpec(
            num_scalar_prefetch=0,
            grid=(nblk,),
            in_specs=[pl.BlockSpec((F, 3, HW), lambda i: (i, 0, 0))],
            out_specs=pl.BlockSpec((F, 8, 64), lambda i: (i, 0, 0)),
        ),
        compiler_params=pltpu.CompilerParams(dimension_semantics=("parallel",)),
    )(ff)
    # (8, 64) row-major flatten == (R<<6)+(G<<3)+B bin ordering.
    return out.reshape(BT_pad, NUM_BINS)[:BT].reshape(B, T, NUM_BINS)


# ---------------------------------------------------------------------------
# Kernel 2: per (batch, time-block): banded similarities + FC + relu
# ---------------------------------------------------------------------------
def _make_sim_band_fc_kernel(lookup_window: int, block_t: int, radius: int):
    C = block_t
    LW = lookup_window

    def kernel(xw_ref, w_ref, b_ref, o_ref, band_ref):
        # xw_ref:  (1, T_pad + 2r, 512) f32  time-zero-padded histograms (per batch)
        # w_ref:   (LW, Dout_pad) f32 ; b_ref: (1, Dout_pad) f32
        # o_ref:   (1, C, Dout_pad) f32 ; band_ref: (C, LW) f32 VMEM scratch
        t0 = pl.multiple_of(pl.program_id(1) * C, C)
        # Window of rows needed for this time block (halo of `radius` on each side,
        # already zero-padded in the wrapper -> matches F.pad zero semantics).
        win = xw_ref[0, pl.ds(t0, C + 2 * radius), :]            # (C+2r, 512)
        q = win[radius:radius + C, :]                            # (C, 512) static slice
        # Only the needed sub-block of sim = x @ x^T, bf16 operands, f32 accumulation.
        sub = lax.dot_general(
            q.astype(jnp.bfloat16), win.astype(jnp.bfloat16),
            (((1,), (1,)), ((), ())),
            preferred_element_type=jnp.float32)                  # (C, C+2r)
        # band[i, l] = sub[i, i + l]  -> C cheap static row slices (no lw*T^2 selects).
        for i in range(C):
            band_ref[i:i + 1, :] = sub[i:i + 1, i:i + LW]
        # FC (+bias) and relu; lane-dense (Dout padded to 128) output store.
        out = jnp.dot(band_ref[...], w_ref[...],
                      preferred_element_type=jnp.float32)        # (C, Dout_pad)
        o_ref[0] = jnp.maximum(out + b_ref[...], 0.0)

    return kernel


def similarities_fc(x, weight, bias, lookup_window, block_t=None):
    """x: (B, T, 512) f32; weight: (Dout, lw); bias: (Dout,) -> (B, T, Dout)."""
    B, T, D = x.shape
    Dout, LW = weight.shape
    assert LW == lookup_window and lookup_window % 2 == 1
    radius = (lookup_window - 1) // 2

    C = block_t if block_t is not None else (8 if T <= 8 else 16)
    NT = pl.cdiv(T, C)
    T_pad = NT * C
    Dout_pad = ((Dout + 127) // 128) * 128                      # lane-dense output

    # zero-pad time by `radius` on each side (F.pad semantics) and up to T_pad.
    xw = jnp.pad(x.astype(jnp.float32),
                 ((0, 0), (radius, T_pad - T + radius), (0, 0)))  # (B, T_pad+2r, D)
    w_t = jnp.pad(weight.T.astype(jnp.float32),
                  ((0, 0), (0, Dout_pad - Dout)))                 # (LW, Dout_pad)
    b_p = jnp.pad(bias.astype(jnp.float32).reshape(1, Dout),
                  ((0, 0), (0, Dout_pad - Dout)))                 # (1, Dout_pad)

    kernel = _make_sim_band_fc_kernel(lookup_window, C, radius)
    out = pl.pallas_call(
        kernel,
        out_shape=jax.ShapeDtypeStruct((B, T_pad, Dout_pad), jnp.float32),
        grid_spec=pltpu.PrefetchScalarGridSpec(
            num_scalar_prefetch=0,
            grid=(B, NT),
            in_specs=[
                pl.BlockSpec((1, T_pad + 2 * radius, D), lambda b, t: (b, 0, 0)),
                pl.BlockSpec((LW, Dout_pad), lambda b, t: (0, 0)),
                pl.BlockSpec((1, Dout_pad), lambda b, t: (0, 0)),
            ],
            out_specs=pl.BlockSpec((1, C, Dout_pad), lambda b, t: (b, t, 0)),
            scratch_shapes=[pltpu.VMEM((C, LW), jnp.float32)],
        ),
        compiler_params=pltpu.CompilerParams(
            dimension_semantics=("parallel", "parallel")),
    )(xw, w_t, b_p)
    return out[:, :T, :Dout]


def color_histograms_forward(frames, weight, bias, lookup_window):
    x = compute_color_histograms(frames)
    return similarities_fc(x, weight, bias, lookup_window)


# ---------------------------------------------------------------------------
# Pure-JAX reference (mirrors the PyTorch module exactly, all f32)
# ---------------------------------------------------------------------------
def reference_histograms(frames):
    B, T, H, W, _ = frames.shape
    f = frames.astype(jnp.int32).reshape(B * T, H * W, 3)
    r, g, b = f[..., 0] >> 5, f[..., 1] >> 5, f[..., 2] >> 5
    bins = (r << 6) + (g << 3) + b                               # (BT, HW)
    hist = jax.vmap(
        lambda bb: jnp.zeros((NUM_BINS,), jnp.float32).at[bb].add(1.0))(bins)
    hist = hist.reshape(B, T, NUM_BINS)
    norm = jnp.sqrt(jnp.sum(hist * hist, axis=-1, keepdims=True))
    return hist / jnp.maximum(norm, 1e-12)


def reference_forward(frames, weight, bias, lookup_window):
    x = reference_histograms(frames)
    B, T = x.shape[0], x.shape[1]
    sim = jnp.einsum("btd,bsd->bts", x, x)
    radius = (lookup_window - 1) // 2
    sim_p = jnp.pad(sim, ((0, 0), (0, 0), (radius, radius)))
    t_idx = jnp.arange(T)[:, None]
    l_idx = jnp.arange(lookup_window)[None, :]
    band = sim_p[:, t_idx, t_idx + l_idx]                        # (B, T, lw)
    out = jnp.einsum("btl,ol->bto", band, weight) + bias
    return jnp.maximum(out, 0.0)


if __name__ == "__main__":
    B, T, H, W = 2, 8, 16, 16
    LOOKUP_WINDOW = 9            # must be odd
    OUTPUT_DIM = 16

    key = jax.random.PRNGKey(0)
    k_frames, k_w, k_b = jax.random.split(key, 3)
    # video frames are uint8 (values 0..255) -- kept 8-bit all the way to the kernel
    frames = jax.random.randint(
        k_frames, (B, T, H, W, 3), 0, 256, dtype=jnp.int32).astype(jnp.uint8)
    # nn.Linear(lookup_window, output_dim): weight (Dout, lw), bias (Dout,)
    fc_weight = jax.random.normal(k_w, (OUTPUT_DIM, LOOKUP_WINDOW), jnp.float32) * 0.1
    fc_bias = jax.random.normal(k_b, (OUTPUT_DIM,), jnp.float32) * 0.1

    hist = jax.block_until_ready(compute_color_histograms(frames))
    out = jax.block_until_ready(
        similarities_fc(hist, fc_weight, fc_bias, LOOKUP_WINDOW))

    hist_ref = reference_histograms(frames)
    out_ref = reference_forward(frames, fc_weight, fc_bias, LOOKUP_WINDOW)

    assert out.shape == (B, T, OUTPUT_DIM), out.shape
    # histogram path is exact (integer counts, f32 normalize)
    assert jnp.allclose(hist, hist_ref, rtol=1e-5, atol=1e-5), float(
        jnp.max(jnp.abs(hist - hist_ref)))
    # similarity matmul uses bf16 MXU operands with f32 accumulation (per perf
    # guidance); tolerance accounts for that relaxation.
    assert jnp.allclose(out, out_ref, rtol=2e-2, atol=2e-2), float(
        jnp.max(jnp.abs(out - out_ref)))

    print("KERNEL_OK")
</pallas_src>

<mosaic_0001>
module attributes {stable_mosaic.version = 11 : i64} {
  func.func @kernel(%arg0: i32, %arg1: memref<8x3x256xi8, #tpu.memory_space<vmem>>, %arg2: memref<8x8x64xf32, #tpu.memory_space<vmem>>) attributes {dimension_semantics = [#tpu.dimension_semantics<parallel>], iteration_bounds = array<i64: 2>, scalar_prefetch = 0 : i64, scratch_operands = 0 : i64, tpu.core_type = #tpu.core_type<tc>, window_params = [{transform_indices = @transform_0, window_bounds = array<i64: 8, 3, 256>}, {transform_indices = @transform_1, window_bounds = array<i64: 8, 8, 64>}]} {
    %0 = tpu.iota {dimensions = array<i32: 0>} : vector<8x256xi32>
    %1 = tpu.iota {dimensions = array<i32: 0>} : vector<64x256xi32>
    %c0_i32 = arith.constant 0 : i32
    %c8_i32 = arith.constant 8 : i32
    %2 = arith.addi %c0_i32, %c8_i32 : i32
    %c1_i32 = arith.constant 1 : i32
    scf.for %arg3 = %c0_i32 to %2 step %c1_i32  : i32 {
      %3 = arith.index_cast %arg3 : i32 to index
      %c0 = arith.constant 0 : index
      %c0_1 = arith.constant 0 : index
      %4 = vector.load %arg1[%3, %c0, %c0_1] : memref<8x3x256xi8, #tpu.memory_space<vmem>>, vector<1x3x256xi8>
      %5 = vector.shape_cast %4 : vector<1x3x256xi8> to vector<3x256xi8>
      %6 = arith.extsi %5 : vector<3x256xi8> to vector<3x256xi32>
      %c255_i32 = arith.constant 255 : i32
      %7 = vector.broadcast %c255_i32 : i32 to vector<3x256xi32>
      %8 = arith.andi %6, %7 : vector<3x256xi32>
      %9 = vector.extract_strided_slice %8 {offsets = [0, 0], sizes = [1, 256], strides = [1, 1]} : vector<3x256xi32> to vector<1x256xi32>
      %c5_i32 = arith.constant 5 : i32
      %10 = vector.broadcast %c5_i32 : i32 to vector<1x256xi32>
      %11 = arith.shrsi %9, %10 : vector<1x256xi32>
      %12 = vector.extract_strided_slice %8 {offsets = [1, 0], sizes = [1, 256], strides = [1, 1]} : vector<3x256xi32> to vector<1x256xi32>
      %c5_i32_2 = arith.constant 5 : i32
      %13 = vector.broadcast %c5_i32_2 : i32 to vector<1x256xi32>
      %14 = arith.shrsi %12, %13 : vector<1x256xi32>
      %15 = vector.extract_strided_slice %8 {offsets = [2, 0], sizes = [1, 256], strides = [1, 1]} : vector<3x256xi32> to vector<1x256xi32>
      %c5_i32_3 = arith.constant 5 : i32
      %16 = vector.broadcast %c5_i32_3 : i32 to vector<1x256xi32>
      %17 = arith.shrsi %15, %16 : vector<1x256xi32>
      %c3_i32 = arith.constant 3 : i32
      %18 = vector.broadcast %c3_i32 : i32 to vector<1x256xi32>
      %19 = arith.shli %14, %18 : vector<1x256xi32>
      %20 = arith.addi %19, %17 : vector<1x256xi32>
      %21 = vector.broadcast %11 : vector<1x256xi32> to vector<8x256xi32>
      %22 = arith.cmpi eq, %0, %21 : vector<8x256xi32>
      %23 = arith.extui %22 : vector<8x256xi1> to vector<8x256xi32>
      %24 = arith.sitofp %23 : vector<8x256xi32> to vector<8x256xf32>
      %25 = arith.truncf %24 : vector<8x256xf32> to vector<8x256xbf16>
      %26 = vector.broadcast %20 : vector<1x256xi32> to vector<64x256xi32>
      %27 = arith.cmpi eq, %1, %26 : vector<64x256xi32>
      %28 = arith.extui %27 : vector<64x256xi1> to vector<64x256xi32>
      %29 = arith.sitofp %28 : vector<64x256xi32> to vector<64x256xf32>
      %30 = arith.truncf %29 : vector<64x256xf32> to vector<64x256xbf16>
      %cst = arith.constant dense<0.000000e+00> : vector<8x64xf32>
      %31 = tpu.matmul %25, %30, %cst {dimension_numbers = #tpu.dot_dimension_numbers<[1], [1], [0], [0], [0, 0, 1, 0], [], []>} : vector<8x256xbf16>, vector<64x256xbf16>, vector<8x64xf32> -> vector<8x64xf32>
      %32 = arith.mulf %31, %31 : vector<8x64xf32>
      %cst_4 = arith.constant dense<0.000000e+00> : vector<8xf32>
      %33 = vector.multi_reduction <add>, %32, %cst_4 [1] : vector<8x64xf32> to vector<8xf32>
      %34 = vector.shape_cast %33 : vector<8xf32> to vector<8x1xf32>
      %cst_5 = arith.constant dense<0.000000e+00> : vector<1xf32>
      %35 = vector.multi_reduction <add>, %34, %cst_5 [0] : vector<8x1xf32> to vector<1xf32>
      %36 = vector.shape_cast %35 : vector<1xf32> to vector<1x1xf32>
      %37 = math.sqrt %36 : vector<1x1xf32>
      %cst_6 = arith.constant 9.99999996E-13 : f32
      %38 = vector.broadcast %cst_6 : f32 to vector<1x1xf32>
      %39 = arith.maximumf %37, %38 : vector<1x1xf32>
      %40 = tpu.reciprocal %39 : vector<1x1xf32> -> vector<1x1xf32>
      %41 = vector.broadcast %40 : vector<1x1xf32> to vector<8x64xf32>
      %42 = arith.mulf %31, %41 : vector<8x64xf32>
      %43 = arith.index_cast %arg3 : i32 to index
      %c0_7 = arith.constant 0 : index
      %c0_8 = arith.constant 0 : index
      %44 = vector.load %arg2[%43, %c0_7, %c0_8] : memref<8x8x64xf32, #tpu.memory_space<vmem>>, vector<1x8x64xf32>
      %45 = vector.shape_cast %44 : vector<1x8x64xf32> to vector<8x64xf32>
      %46 = vector.shape_cast %42 : vector<8x64xf32> to vector<1x8x64xf32>
      tpu.vector_store %arg2[%43, %c0_7, %c0_8], %46 {strides = array<i32>} : memref<8x8x64xf32, #tpu.memory_space<vmem>>, vector<1x8x64xf32>,
    }
    %c8_i32_0 = arith.constant 8 : i32
    return
  }
  func.func @transform_0(%arg0: i32) -> (i32, i32, i32) {
    %c0_i32 = arith.constant 0 : i32
    %c0_i32_0 = arith.constant 0 : i32
    %c0_i32_1 = arith.constant 0 : i32
    return %arg0, %c0_i32, %c0_i32_0 : i32, i32, i32
  }
  func.func @transform_1(%arg0: i32) -> (i32, i32, i32) {
    %c0_i32 = arith.constant 0 : i32
    %c0_i32_0 = arith.constant 0 : i32
    %c0_i32_1 = arith.constant 0 : i32
    return %arg0, %c0_i32, %c0_i32_0 : i32, i32, i32
  }
}

</mosaic_0001>

<llo_original>
// kernel: tpu_custom_call.1
$region0: #{tpu_custom_call.1}
  #allocation0 [shape = 'u32[]', space=smem, size = 0x4, offset = 0x4, fixed_abs, tag = 'smem constant byte address 0x4 - core index']
  #allocation1 [shape = 'u32[144,128]{1,0:T(1,128)}', space=vmem, size = 0x12000, scoped, tag = 'internal scratch']
  %s0 = inlined_call_operand.vmem [shape: s8[16,3,256], index: 0, kind: input, shape index: {}]
  %s1 = inlined_call_operand.hbm [shape: f32[16,8,64], index: 1, kind: output, shape index: {}]
  %s2 = sld [smem:[#allocation0]]
  $region44: #{tpu_custom_call.1} parent=0
    _
  %s4 = ssub.s32 1, %s2
  %s5 = scalar_select 0, %s4, %s2
  $region1: #{tpu_custom_call.1} parent=0
    #allocation2 [shape = 'u8[65536]{0}', space=vmem, size = 0x10000, scoped, tag = 'output window, operand 0']
    #allocation3 [shape = 's32[2]{0}', space=sflag, size = 0x8, scoped, tag = 'scoped memory for tpu_custom_call.1']
    %6 = vsyncpa [#allocation3], 0
    %s7 = scalar_lea.sflag [#allocation3], 1
    %8 = vsyncpa %s7, 0
    loop: start=0, step=1, limit=4
    $region2: #{tpu_custom_call.1} parent=1 // loop_pre_header
      _
    $region3: #{tpu_custom_call.1} parent=1 // loop_header
      %s10 = sphi 0, %s14
      %p11 = scmp.ge.s32.totalorder %s10, 4
      %s20 = sphi 0, %s22
      %s23 = sphi 0, %s20
      %s24 = sphi 0, %s23
      %s40 = sphi 0, %s24
      %s46 = sphi 0, %s48
      %s49 = sphi 0, %s46
      %s50 = sphi 0, %s49
      %s66 = sphi 0, %s50
    $region4: #{tpu_custom_call.1} parent=1 // loop_header_branch
      %13 = sbr.rel (%p11) target = $region8
    $region5: #{tpu_custom_call.1} parent=1 // loop_body
      %s15 = ssub.s32 %s10, 1
      %s16 = ssub.s32 %s10, 2
      %s17 = sadd.s32 %s10, 1
      %s18 = ssub.s32 %s10, %s17
      %p19 = scmp.eq.s32.totalorder %s18, 0
      %s21 = sadd.s32 %s20, 1
      %s22 = scalar_select %p19, %s20, %s21
      %p25 = pneg %p19
      %p26 = scmp.eq.s32.totalorder %s10, 1
      %p27 = por %p25, %p26
      %p28 = scmp.ne.s32.totalorder %s20, %s23
      %p29 = scmp.eq.s32.totalorder %s10, 0
      %p30 = por %p28, %p29
      %p31 = scmp.ne.s32.totalorder %s20, %s23
      %p32 = scmp.eq.s32.totalorder %s15, 1
      %p33 = por %p31, %p32
      %p34 = scmp.ne.s32.totalorder %s23, %s24
      %p35 = scmp.eq.s32.totalorder %s15, 0
      %p36 = por %p34, %p35
      %p37 = scmp.ne.s32.totalorder %s23, %s24
      %p38 = scmp.eq.s32.totalorder %s16, 1
      %p39 = por %p37, %p38
      %p41 = scmp.ne.s32.totalorder %s24, %s40
      %p42 = scmp.eq.s32.totalorder %s16, 0
      %p43 = por %p41, %p42
      %s44 = ssub.s32 %s10, %s17
      %p45 = scmp.eq.s32.totalorder %s44, 0
      %s47 = sadd.s32 %s46, 1
      %s48 = scalar_select %p45, %s46, %s47
      %p51 = pneg %p45
      %p52 = scmp.eq.s32.totalorder %s10, 1
      %p53 = por %p51, %p52
      %p54 = scmp.ne.s32.totalorder %s46, %s49
      %p55 = scmp.eq.s32.totalorder %s10, 0
      %p56 = por %p54, %p55
      %p57 = scmp.ne.s32.totalorder %s46, %s49
      %p58 = scmp.eq.s32.totalorder %s15, 1
      %p59 = por %p57, %p58
      %p60 = scmp.ne.s32.totalorder %s49, %s50
      %p61 = scmp.eq.s32.totalorder %s15, 0
      %p62 = por %p60, %p61
      %p63 = scmp.ne.s32.totalorder %s49, %s50
      %p64 = scmp.eq.s32.totalorder %s16, 1
      %p65 = por %p63, %p64
      %p67 = scmp.ne.s32.totalorder %s50, %s66
      %p68 = scmp.eq.s32.totalorder %s16, 0
      %p69 = por %p67, %p68
      %p70 = scmp.le.s32.totalorder 1, %s10
      %p71 = scmp.lt.s32.totalorder %s10, 3
      %p72 = pnand %p70, %p71
      %p73 = pneg %p72
      // Predicated region
      $region9: #{tpu_custom_call.1} parent=5 // pred_check
        _
      $region10: #{tpu_custom_call.1} parent=5 // pred_check_branch
        %75 = sbr.rel (%p72) target = $region12
      $region11: #{tpu_custom_call.1} parent=5 // pred_region
        %s76 = ssub.s32 %s10, 1
      $region12: #{tpu_custom_call.1} parent=5 // pred_fallthru
        _
      %p77 = scmp.lt.s32.totalorder %s10, 2
      // Predicated region
      $region13: #{tpu_custom_call.1} parent=5 // pred_check
        %p78 = pneg %p77
      $region14: #{tpu_custom_call.1} parent=5 // pred_check_branch
        %80 = sbr.rel (%p78) target = $region16
      $region15: #{tpu_custom_call.1} parent=5 // pred_region
        // Predicated region
        $region17: #{tpu_custom_call.1} parent=15 // pred_check
          %p81 = pneg %p30
        $region18: #{tpu_custom_call.1} parent=15 // pred_check_branch
          %83 = sbr.rel (%p81) target = $region20
        $region19: #{tpu_custom_call.1} parent=15 // pred_region
          %s84 = smul.u32 8, %s10
          %p85 = scmp.lt.s32.totalorder %s84, 15
          %s86 = scalar_select %p85, %s84, 15
          %s87 = smul.addr %s86, 2
          %s88 = scalar_lea.vmem %s0, %s87
          %s89 = smul.u32 8, %s10
        $region20: #{tpu_custom_call.1} parent=15 // pred_fallthru
          _
      $region16: #{tpu_custom_call.1} parent=5 // pred_fallthru
        _
      %p90 = scmp.le.s32.totalorder 1, %s10
      %p91 = scmp.lt.s32.totalorder %s10, 3
      %p92 = pnand %p90, %p91
      %p93 = pneg %p92
      // Predicated region
      $region21: #{tpu_custom_call.1} parent=5 // pred_check
        _
      $region22: #{tpu_custom_call.1} parent=5 // pred_check_branch
        %95 = sbr.rel (%p92) target = $region24
      $region23: #{tpu_custom_call.1} parent=5 // pred_region
        %s96 = ssub.s32 %s10, 1
        %s97 = smul.u32 8, %s15
        %p98 = scmp.lt.s32.totalorder %s97, 15
        %s99 = scalar_select %p98, %s97, 15
        %s100 = smul.addr %s99, 2
        %s101 = scalar_lea.vmem %s0, %s100
        %p102 = pneg %p36
        %p103 = pneg %p33
        %p104 = pneg %p62
        %p105 = pneg %p59
        %s106 = sand.u32 %s49, 1
        %s107 = scalar_lea.sflag [#allocation3], %s106
        %s108 = sand.u32 %s49, 1
        %s109 = smul.addr %s108, 64
        %s110 = scalar_lea.vmem [#allocation2], %s109
        %s111 = smul.u32 8, %s15
        %p112 = scmp.lt.s32.totalorder %s111, 15
        %s113 = scalar_select %p112, %s111, 15
        %s114 = smul.addr %s113, 2
        %s115 = scalar_lea.vmem %s0, %s114
        %s116 = smul.u32 8, %s15
        %s117 = smul.u32 8, %s15
        %v119 = vlaneseq
        %v120 = vshrl.u32 %v119, 7
        %v121 = vadd.s32 %v120, 8
        %v122 = vadd.s32 %v120, 16
        %v123 = vadd.s32 %v120, 24
        %v124 = vadd.s32 %v120, 32
        %v125 = vadd.s32 %v120, 40
        %v126 = vadd.s32 %v120, 48
        %v127 = vadd.s32 %v120, 56
        loop: start=0, step=1, limit=8
        $region25: #{tpu_custom_call.1} parent=23 // loop_pre_header
          _
        $region26: #{tpu_custom_call.1} parent=23 // loop_header
          %s129 = sphi 0, %s133
          %p130 = scmp.ge.s32.totalorder %s129, 8
        $region27: #{tpu_custom_call.1} parent=23 // loop_header_branch
          %132 = sbr.rel (%p130) target = $region31
        $region28: #{tpu_custom_call.1} parent=23 // loop_body
          %s134 = smul.u32 %s129, 2
          %s135 = scalar_lea.vmem %s115, %s134
          %v136 = vld [vmem:[%s135] sm:$0x3]
          %v137 = vunpack.c.0.s8 %v136
          %v138 = vand.u32 %v137, 255
          %v139 = vshra.s32 %v138, 5
          %v140 = vshll.u32 %v139, 3
          %v141 = vrot.slane %v139, 5
          %v142 = vrot.slane %v141, 4
          %v143 = vadd.s32 %v140, %v142
          %v144 = vlaneseq
          %v145 = vshrl.u32 %v144, 7
          %v146 = vsub.s32 0, %v145
          %v147 = vrot.slane %v139, %v146
          %v148 = vlaneseq
          %v149 = vshrl.u32 %v148, 7
          %v150 = vsub.s32 4, %v149
          %v151 = vrot.slane %v139, %v150
          %v152 = vlaneseq
          %v153 = vshrl.u32 %v152, 7
          %v154 = vsub.s32 0, %v153
          %v155 = vrot.slane %v147, %v154
          %v156 = vlaneseq
          %v157 = vshrl.u32 %v156, 7
          %v158 = vsub.s32 0, %v157
          %v159 = vrot.slane %v151, %v158
          %vm160 = vcmp.eq.s32.totalorder %v120, %v155
          %vm161 = vcmp.eq.s32.totalorder %v120, %v159
          %v162 = vsel %vm160, 1, 0
          %v163 = vsel %vm161, 1, 0
          %v164 = vcvt.s32.f32 %v162
          %v165 = vcvt.s32.f32 %v163
          %v166 = vpack.c.bf16 %v164, %v164
          %v167 = vpack.c.bf16 %v165, %v165
          %v168 = vlaneseq
          %v169 = vshrl.u32 %v168, 7
          %v170 = vsub.s32 1, %v169
          %v171 = vrot.slane %v143, %v170
          %v172 = vlaneseq
          %v173 = vshrl.u32 %v172, 7
          %v174 = vsub.s32 5, %v173
          %v175 = vrot.slane %v143, %v174
          %v176 = vlaneseq
          %v177 = vshrl.u32 %v176, 7
          %v178 = vsub.s32 1, %v177
          %v179 = vrot.slane %v171, %v178
          %v180 = vlaneseq
          %v181 = vshrl.u32 %v180, 7
          %v182 = vsub.s32 1, %v181
          %v183 = vrot.slane %v175, %v182
          %vm184 = vcmp.eq.s32.totalorder %v120, %v179
          %vm185 = vcmp.eq.s32.totalorder %v120, %v183
          %vm186 = vcmp.eq.s32.totalorder %v121, %v179
          %vm187 = vcmp.eq.s32.totalorder %v121, %v183
          %vm188 = vcmp.eq.s32.totalorder %v122, %v179
          %vm189 = vcmp.eq.s32.totalorder %v122, %v183
          %vm190 = vcmp.eq.s32.totalorder %v123, %v179
          %vm191 = vcmp.eq.s32.totalorder %v123, %v183
          %vm192 = vcmp.eq.s32.totalorder %v124, %v179
          %vm193 = vcmp.eq.s32.totalorder %v124, %v183
          %vm194 = vcmp.eq.s32.totalorder %v125, %v179
          %vm195 = vcmp.eq.s32.totalorder %v125, %v183
          %vm196 = vcmp.eq.s32.totalorder %v126, %v179
          %vm197 = vcmp.eq.s32.totalorder %v126, %v183
          %vm198 = vcmp.eq.s32.totalorder %v127, %v179
          %vm199 = vcmp.eq.s32.totalorder %v127, %v183
          %v200 = vsel %vm184, 1, 0
          %v201 = vsel %vm185, 1, 0
          %v202 = vsel %vm186, 1, 0
          %v203 = vsel %vm187, 1, 0
          %v204 = vsel %vm188, 1, 0
          %v205 = vsel %vm189, 1, 0
          %v206 = vsel %vm190, 1, 0
          %v207 = vsel %vm191, 1, 0
          %v208 = vsel %vm192, 1, 0
          %v209 = vsel %vm193, 1, 0
          %v210 = vsel %vm194, 1, 0
          %v211 = vsel %vm195, 1, 0
          %v212 = vsel %vm196, 1, 0
          %v213 = vsel %vm197, 1, 0
          %v214 = vsel %vm198, 1, 0
          %v215 = vsel %vm199, 1, 0
          %v216 = vcvt.s32.f32 %v200
          %v217 = vcvt.s32.f32 %v201
          %v218 = vcvt.s32.f32 %v202
          %v219 = vcvt.s32.f32 %v203
          %v220 = vcvt.s32.f32 %v204
          %v221 = vcvt.s32.f32 %v205
          %v222 = vcvt.s32.f32 %v206
          %v223 = vcvt.s32.f32 %v207
          %v224 = vcvt.s32.f32 %v208
          %v225 = vcvt.s32.f32 %v209
          %v226 = vcvt.s32.f32 %v210
          %v227 = vcvt.s32.f32 %v211
          %v228 = vcvt.s32.f32 %v212
          %v229 = vcvt.s32.f32 %v213
          %v230 = vcvt.s32.f32 %v214
          %v231 = vcvt.s32.f32 %v215
          %v232 = vpack.c.bf16 %v218, %v216
          %v233 = vpack.c.bf16 %v219, %v217
          %v234 = vpack.c.bf16 %v222, %v220
          %v235 = vpack.c.bf16 %v223, %v221
          %v236 = vpack.c.bf16 %v226, %v224
          %v237 = vpack.c.bf16 %v227, %v225
          %v238 = vpack.c.bf16 %v230, %v228
          %v239 = vpack.c.bf16 %v231, %v229
          %240 = vmatprep.subr.bf16.mxu0 0
          %241 = vmatpush1.bf16.xpose.msra.mxu0 0
          %242 = vmatprep.subr.bf16.mxu0 0
          %243 = vmatpush1.bf16.xpose.msra.mxu0 0
          %244 = vmatprep.subr.bf16.mxu0 0
          %245 = vmatpush1.bf16.xpose.msra.mxu0 0
          %246 = vmatprep.subr.bf16.mxu0 0
          %247 = vmatpush1.bf16.xpose.msra.mxu0 0
          %248 = vmatprep.subr.bf16.mxu0 %v239
          %249 = vmatpush1.bf16.xpose.msra.mxu0 %v238
          %250 = vmatprep.subr.bf16.mxu0 %v237
          %251 = vmatpush1.bf16.xpose.msra.mxu0 %v236
          %252 = vmatprep.subr.bf16.mxu0 %v235
          %253 = vmatpush1.bf16.xpose.msra.mxu0 %v234
          %254 = vmatprep.subr.bf16.mxu0 %v233
          %255 = vmatpush1.bf16.xpose.msra.mxu0 %v232
          %256 = vmatprep.subr.bf16.mxu0 0
          %257 = vmatpush2.bf16.xpose.msra.mxu0 0
          %258 = vmatprep.subr.bf16.mxu0 0
          %259 = vmatpush2.bf16.xpose.msra.mxu0 0
          %260 = vmatprep.subr.bf16.mxu0 0
          %261 = vmatpush2.bf16.xpose.msra.mxu0 0
          %262 = vmatprep.subr.bf16.mxu0 0
          %263 = vmatpush2.bf16.xpose.msra.mxu0 0
          %264 = vmatprep.subr.bf16.mxu0 0
          %265 = vmatpush2.bf16.xpose.msra.mxu0 0
          %266 = vmatprep.subr.bf16.mxu0 0
          %267 = vmatpush2.bf16.xpose.msra.mxu0 0
          %268 = vmatprep.subr.bf16.mxu0 0
          %269 = vmatpush2.bf16.xpose.msra.mxu0 0
          %270 = vmatprep.subr.bf16.mxu0 0
          %271 = vmatpush2.bf16.xpose.msra.mxu0 0
          %272 = vmatprep.mubr.bf16.mxu0 %v167
          %273 = vmatmul.mubr.bf16.gmra.mxu0 %v166
          %v274 = vpop.f32.mrf.mxu0
          %v275 = vadd.f32 0.0, %v274
          %v276 = vpop.f32.mrf.mxu0
          %v277 = vpop.f32.mrf.mxu0
          %v278 = vpop.f32.mrf.mxu0
          %279 = vdwg.mxu0
          %v280 = vmul.f32 %v275, %v275
          %vm281 = vcmask 523264
          %v282 = vsel %vm281, %v280, 0.0
          %283 = vadd.xlane.f32.xlu0 %v282
          %v284 = vpop.xlane.xlu0 %283
          %v285 = vrot.slane %v284, 4
          %v286 = vadd.f32 %v284, %v285
          %v287 = vrot.slane %v286, 2
          %v288 = vadd.f32 %v286, %v287
          %v289 = vrot.slane %v288, 1
          %v290 = vadd.f32 %v288, %v289
          %v291 = vrsqrt.pop %v290
          %v292 = vmul.f32 %v290, %v291
          %vm293 = vcmp.eq.f32.partialorder %v290, inf
          %v294 = vsel %vm293, %v290, %v292
          %vm295 = vcmp.eq.f32.partialorder %v290, 0.0
          %v296 = vand.u32 %v290, 2147483648
          %v297 = vsel %vm295, %v296, %v294
          %v298 = vmax.f32 %v297, 1e-12
          %v299 = vrcp.pop %v298
          %v300 = vmul.f32 %v275, %v299
          %s301 = smul.u32 %s129, 8
          %s302 = scalar_lea.vmem %s110, %s301 [#allocation2]
          %303 = vst.msk [vmem:[%s302] sm:$0xff] %vm281, %v300
        $region29: #{tpu_custom_call.1} parent=23 // loop_footer
          %s133 = sadd.s32 1, %s129
        $region30: #{tpu_custom_call.1} parent=23 // loop_footer_branch
          %128 = sbr.rel target = $region26
        $region31: #{tpu_custom_call.1} parent=23 // loop_exit
          _
        %s304 = sand.u32 %s49, 1
        %s305 = scalar_lea.sflag [#allocation3], %s304
        %s306 = sand.u32 %s49, 1
        %s307 = smul.addr %s306, 64
        %s308 = scalar_lea.vmem [#allocation2], %s307
        // Predicated region
        $region32: #{tpu_custom_call.1} parent=23 // pred_check
          %p309 = pneg %p59
        $region33: #{tpu_custom_call.1} parent=23 // pred_check_branch
          %311 = sbr.rel (%p309) target = $region35
        $region34: #{tpu_custom_call.1} parent=23 // pred_region
          %s312 = smul.u32 8, %s15
          %s314 = ssub.s32 1024, 1024
          %315 = vsyncadd %s305, %s314
          %s316 = smul.addr %s312, 128
          %s317 = scalar_lea.hbm %s1, %s316
          %s318 = sshll.u32 %s308, 4
          %s319 = int_to_ptr.vmem [resolvable:$true] %s318
          %324 = dma.vmem_to_hbm [thread:$0]  %s319, 1024, %s317, %s305, 128, 128, 8
        $region35: #{tpu_custom_call.1} parent=23 // pred_fallthru
          _
      $region24: #{tpu_custom_call.1} parent=5 // pred_fallthru
        _
      %p325 = scmp.le.s32.totalorder 2, %s10
      // Predicated region
      $region36: #{tpu_custom_call.1} parent=5 // pred_check
        %p326 = pneg %p325
      $region37: #{tpu_custom_call.1} parent=5 // pred_check_branch
        %328 = sbr.rel (%p326) target = $region39
      $region38: #{tpu_custom_call.1} parent=5 // pred_region
        %s329 = ssub.s32 %s10, 2
        // Predicated region
        $region40: #{tpu_custom_call.1} parent=38 // pred_check
          %p330 = pneg %p65
        $region41: #{tpu_custom_call.1} parent=38 // pred_check_branch
          %332 = sbr.rel (%p330) target = $region43
        $region42: #{tpu_custom_call.1} parent=38 // pred_region
          %s333 = sand.u32 %s50, 1
          %s334 = scalar_lea.sflag [#allocation3], %s333
          %s335 = sand.u32 %s50, 1
          %s336 = smul.addr %s335, 64
          %s337 = scalar_lea.vmem [#allocation2], %s336
          %338 = dma.done %s334, 1024
        $region43: #{tpu_custom_call.1} parent=38 // pred_fallthru
          _
      $region39: #{tpu_custom_call.1} parent=5 // pred_fallthru
        _
    $region6: #{tpu_custom_call.1} parent=1 // loop_footer
      %s14 = sadd.s32 1, %s10
    $region7: #{tpu_custom_call.1} parent=1 // loop_footer_branch
      %9 = sbr.rel target = $region3
    $region8: #{tpu_custom_call.1} parent=1 // loop_exit
      _
    %339 = vsyncpa [#allocation3], 1
    %s340 = scalar_lea.sflag [#allocation3], 1
    %341 = vsyncpa %s340, 1

</llo_original>
